<compile_context>
chip_gen: v5e
topology: v5e:2x2
jax: 0.10.0
libtpu: 0.0.40
codegen_flags: <defaults>
</compile_context>

<pallas_src>
import jax
import jax.numpy as jnp
from jax.experimental import pallas as pl
from jax.experimental.pallas import tpu as pltpu

D_MODEL = 64
MAX_LEN = 5000
_LANE = 128


def _sublane_multiple(dtype):
    """Minimum second-to-last-dim tile multiple for this dtype's packing."""
    itemsize = jnp.dtype(dtype).itemsize
    if itemsize >= 4:
        return 8
    if itemsize == 2:
        return 16
    return 32


def _add_pe_kernel(x_ref, pe_ref, o_ref):
    # In-kernel cast of the pe tile (free VPU work hidden under the DMAs);
    # avoids a wrapper-side full-table astype copy when x is a narrower dtype.
    o_ref[...] = (x_ref[...] + pe_ref[...].astype(x_ref.dtype)).astype(o_ref.dtype)


def _tiled_add(x2d, pe2d, *, max_tile_rows):
    """out[r, :] = x2d[r, :] + pe2d[r, :] for every row of x2d.

    pe2d may have MORE rows than x2d; the matching leading rows are selected
    block-by-block via the BlockSpec index_map (no wrapper-side slice/copy of
    the positional table).  The tile never exceeds x2d's row count, so every
    grid block starts inside both arrays and only the ragged tail block is
    partial (masked stores handled by Pallas) — explicit, not incidental.
    """
    rows, lanes = x2d.shape
    sub = _sublane_multiple(x2d.dtype)
    cap = max(sub, (max_tile_rows // sub) * sub)
    tile = min((rows // sub) * sub, cap)
    grid = (pl.cdiv(rows, tile),)
    return pl.pallas_call(
        _add_pe_kernel,
        out_shape=jax.ShapeDtypeStruct((rows, lanes), x2d.dtype),
        grid_spec=pl.GridSpec(
            grid=grid,
            in_specs=[
                pl.BlockSpec((tile, lanes), lambda i: (i, 0)),   # x tile
                pl.BlockSpec((tile, lanes), lambda i: (i, 0)),   # matching pe rows
            ],
            out_specs=pl.BlockSpec((tile, lanes), lambda i: (i, 0)),
        ),
        compiler_params=pltpu.CompilerParams(
            dimension_semantics=("arbitrary",),
        ),
    )(x2d, pe2d)


def learnable_positional_encoding(x, pe, *, max_tile_rows=4096,
                                  min_pallas_bytes=16 * 1024):
    """Pallas TPU forward of LearnablePositionalEncoding: x + pe[:seq_len].

    x:  (seq_len, d_model) ; pe: (max_len, d_model) with seq_len <= max_len.
    """
    S, D = x.shape
    max_len, D_pe = pe.shape
    assert D == D_pe, "d_model mismatch"
    assert S <= max_len, "sequence longer than positional table"

    sub = _sublane_multiple(x.dtype)
    itemsize = jnp.dtype(x.dtype).itemsize

    # Tiny calls: a standalone pallas_call is essentially 100% fixed launch /
    # pipeline overhead; let XLA fuse the add with neighbouring ops instead.
    if S * D * itemsize < min_pallas_bytes or S < sub:
        return (x + pe[:S].astype(x.dtype)).astype(x.dtype)

    foldable = (S * D) % _LANE == 0 and (max_len * D) % _LANE == 0
    if foldable and (S * D) // _LANE >= sub:
        # Lane-dense path: row-major fold (S, D) -> (S*D/128, 128).  Pure,
        # copy-free reshape of contiguous data; x and pe stay elementwise
        # aligned, and every store is a full unmasked 128-lane vst.
        rows = (S * D) // _LANE
        x2d = x.reshape(rows, _LANE)
        pe2d = pe.reshape((max_len * D) // _LANE, _LANE)
        out2d = _tiled_add(x2d, pe2d, max_tile_rows=max_tile_rows)
        return out2d.reshape(S, D)

    # Fallback (odd seq_len / non-foldable d_model): keep (seq, d_model) layout.
    # Correct for any (S, D); stores may be lane-masked when d_model < 128.
    return _tiled_add(x, pe, max_tile_rows=max_tile_rows)


if __name__ == "__main__":
    key = jax.random.PRNGKey(0)
    k_x1, k_x2, k_x3, k_pe = jax.random.split(key, 4)

    # Deterministic parameter init matching nn.init.normal_(pe, mean=0, std=0.02)
    pe = 0.02 * jax.random.normal(k_pe, (MAX_LEN, D_MODEL), dtype=jnp.float32)

    fwd = jax.jit(learnable_positional_encoding)

    # 1) Even sequence -> lane-dense folded path, single grid step.
    s1 = 256
    x1 = jax.random.normal(k_x1, (s1, D_MODEL), dtype=jnp.float32)
    o1 = jax.block_until_ready(fwd(x1, pe))
    assert o1.shape == (s1, D_MODEL)
    assert jnp.allclose(o1, x1 + pe[:s1], atol=1e-6), "mismatch (even S)"

    # 2) Odd sequence -> unfolded fallback path with a ragged tail block.
    s2 = 1001
    x2 = jax.random.normal(k_x2, (s2, D_MODEL), dtype=jnp.float32)
    o2 = jax.block_until_ready(fwd(x2, pe))
    assert o2.shape == (s2, D_MODEL)
    assert jnp.allclose(o2, x2 + pe[:s2], atol=1e-6), "mismatch (odd S)"

    # 3) Full-length sequence -> folded path, partial tail block at the table edge.
    s3 = MAX_LEN
    x3 = jax.random.normal(k_x3, (s3, D_MODEL), dtype=jnp.float32)
    o3 = jax.block_until_ready(fwd(x3, pe))
    assert jnp.allclose(o3, x3 + pe, atol=1e-6), "mismatch (full-length S)"

    # 4) Tiny sequence -> XLA bypass (kernel would be pure launch overhead).
    s4 = 7
    x4 = jax.random.normal(k_x1, (s4, D_MODEL), dtype=jnp.float32)
    o4 = jax.block_until_ready(fwd(x4, pe))
    assert jnp.allclose(o4, x4 + pe[:s4], atol=1e-6), "mismatch (tiny S)"

    print("KERNEL_OK")
</pallas_src>

<mosaic_0001>
module attributes {stable_mosaic.version = 11 : i64} {
  func.func @_add_pe_kernel(%arg0: i32, %arg1: memref<128x128xf32, #tpu.memory_space<vmem>>, %arg2: memref<128x128xf32, #tpu.memory_space<vmem>>, %arg3: memref<128x128xf32, #tpu.memory_space<vmem>>) attributes {dimension_semantics = [#tpu.dimension_semantics<arbitrary>], iteration_bounds = array<i64: 1>, scalar_prefetch = 0 : i64, scratch_operands = 0 : i64, tpu.core_type = #tpu.core_type<tc>, window_params = [{transform_indices = @transform_0, window_bounds = array<i64: 128, 128>}, {transform_indices = @transform_1, window_bounds = array<i64: 128, 128>}, {transform_indices = @transform_2, window_bounds = array<i64: 128, 128>}]} {
    %c0 = arith.constant 0 : index
    %c0_0 = arith.constant 0 : index
    %0 = vector.load %arg1[%c0, %c0_0] : memref<128x128xf32, #tpu.memory_space<vmem>>, vector<128x128xf32>
    %c0_1 = arith.constant 0 : index
    %c0_2 = arith.constant 0 : index
    %1 = vector.load %arg2[%c0_1, %c0_2] : memref<128x128xf32, #tpu.memory_space<vmem>>, vector<128x128xf32>
    %2 = arith.addf %0, %1 : vector<128x128xf32>
    %c0_3 = arith.constant 0 : index
    %c0_4 = arith.constant 0 : index
    %3 = vector.load %arg3[%c0_3, %c0_4] : memref<128x128xf32, #tpu.memory_space<vmem>>, vector<128x128xf32>
    tpu.vector_store %arg3[%c0_3, %c0_4], %2 {strides = array<i32>} : memref<128x128xf32, #tpu.memory_space<vmem>>, vector<128x128xf32>,
    return
  }
  func.func @transform_0(%arg0: i32) -> (i32, i32) {
    %c0_i32 = arith.constant 0 : i32
    %c0_i32_0 = arith.constant 0 : i32
    return %arg0, %c0_i32 : i32, i32
  }
  func.func @transform_1(%arg0: i32) -> (i32, i32) {
    %c0_i32 = arith.constant 0 : i32
    %c0_i32_0 = arith.constant 0 : i32
    return %arg0, %c0_i32 : i32, i32
  }
  func.func @transform_2(%arg0: i32) -> (i32, i32) {
    %c0_i32 = arith.constant 0 : i32
    %c0_i32_0 = arith.constant 0 : i32
    return %arg0, %c0_i32 : i32, i32
  }
}

</mosaic_0001>

<llo_original>
// kernel: learnable_positional_encoding.1
$region0: #{learnable_positional_encoding.1}
  #allocation0 [shape = 'u32[]', space=smem, size = 0x4, offset = 0x4, fixed_abs, tag = 'smem constant byte address 0x4 - core index']
  #allocation1 [shape = 'u32[72,128]{1,0:T(1,128)}', space=vmem, size = 0x9000, scoped, tag = 'internal scratch']
  %s0 = inlined_call_operand.vmem [shape: f32[128,128], index: 0, kind: input, shape index: {}]
  %s1 = inlined_call_operand.vmem [shape: f32[2500,128], index: 1, kind: input, shape index: {}]
  %s2 = inlined_call_operand.vmem [shape: f32[128,128], index: 2, kind: output, shape index: {}]
  %s3 = sld [smem:[#allocation0]]
  $region18: #{learnable_positional_encoding.1} parent=0
    _
  %s5 = ssub.s32 1, %s3
  %s6 = scalar_select 0, %s5, %s3
  // Predicated region
  $region2: #{learnable_positional_encoding.1} parent=0 // pred_check
    _
  $region3: #{learnable_positional_encoding.1} parent=0 // pred_check_branch
    %8 = sbr.rel (0) target = $region5
  $region4: #{learnable_positional_encoding.1} parent=0 // pred_region
    _
  $region5: #{learnable_positional_encoding.1} parent=0 // pred_fallthru
    _
  // Predicated region
  $region6: #{learnable_positional_encoding.1} parent=0 // pred_check
    _
  $region7: #{learnable_positional_encoding.1} parent=0 // pred_check_branch
    %10 = sbr.rel (0) target = $region9
  $region8: #{learnable_positional_encoding.1} parent=0 // pred_region
    _
  $region9: #{learnable_positional_encoding.1} parent=0 // pred_fallthru
    _
  %v11 = vld [vmem:[%s0] sm:$0xff]
  %v12 = vld [vmem:[%s0 + $0x8] sm:$0xff]
  %v13 = vld [vmem:[%s0 + $0x10] sm:$0xff]
  %v14 = vld [vmem:[%s0 + $0x18] sm:$0xff]
  %v15 = vld [vmem:[%s0 + $0x20] sm:$0xff]
  %v16 = vld [vmem:[%s0 + $0x28] sm:$0xff]
  %v17 = vld [vmem:[%s0 + $0x30] sm:$0xff]
  %v18 = vld [vmem:[%s0 + $0x38] sm:$0xff]
  %v19 = vld [vmem:[%s0 + $0x40] sm:$0xff]
  %v20 = vld [vmem:[%s0 + $0x48] sm:$0xff]
  %v21 = vld [vmem:[%s0 + $0x50] sm:$0xff]
  %v22 = vld [vmem:[%s0 + $0x58] sm:$0xff]
  %v23 = vld [vmem:[%s0 + $0x60] sm:$0xff]
  %v24 = vld [vmem:[%s0 + $0x68] sm:$0xff]
  %v25 = vld [vmem:[%s0 + $0x70] sm:$0xff]
  %v26 = vld [vmem:[%s0 + $0x78] sm:$0xff]
  %v27 = vld [vmem:[%s1] sm:$0xff]
  %v28 = vld [vmem:[%s1 + $0x8] sm:$0xff]
  %v29 = vld [vmem:[%s1 + $0x10] sm:$0xff]
  %v30 = vld [vmem:[%s1 + $0x18] sm:$0xff]
  %v31 = vld [vmem:[%s1 + $0x20] sm:$0xff]
  %v32 = vld [vmem:[%s1 + $0x28] sm:$0xff]
  %v33 = vld [vmem:[%s1 + $0x30] sm:$0xff]
  %v34 = vld [vmem:[%s1 + $0x38] sm:$0xff]
  %v35 = vld [vmem:[%s1 + $0x40] sm:$0xff]
  %v36 = vld [vmem:[%s1 + $0x48] sm:$0xff]
  %v37 = vld [vmem:[%s1 + $0x50] sm:$0xff]
  %v38 = vld [vmem:[%s1 + $0x58] sm:$0xff]
  %v39 = vld [vmem:[%s1 + $0x60] sm:$0xff]
  %v40 = vld [vmem:[%s1 + $0x68] sm:$0xff]
  %v41 = vld [vmem:[%s1 + $0x70] sm:$0xff]
  %v42 = vld [vmem:[%s1 + $0x78] sm:$0xff]
  %v43 = vadd.f32 %v11, %v27
  %v44 = vadd.f32 %v12, %v28
  %v45 = vadd.f32 %v13, %v29
  %v46 = vadd.f32 %v14, %v30
  %v47 = vadd.f32 %v15, %v31
  %v48 = vadd.f32 %v16, %v32
  %v49 = vadd.f32 %v17, %v33
  %v50 = vadd.f32 %v18, %v34
  %v51 = vadd.f32 %v19, %v35
  %v52 = vadd.f32 %v20, %v36
  %v53 = vadd.f32 %v21, %v37
  %v54 = vadd.f32 %v22, %v38
  %v55 = vadd.f32 %v23, %v39
  %v56 = vadd.f32 %v24, %v40
  %v57 = vadd.f32 %v25, %v41
  %v58 = vadd.f32 %v26, %v42
  %59 = vst [vmem:[%s2] sm:$0xff] %v43
  %60 = vst [vmem:[%s2 + $0x8] sm:$0xff] %v44
  %61 = vst [vmem:[%s2 + $0x10] sm:$0xff] %v45
  %62 = vst [vmem:[%s2 + $0x18] sm:$0xff] %v46
  %63 = vst [vmem:[%s2 + $0x20] sm:$0xff] %v47
  %64 = vst [vmem:[%s2 + $0x28] sm:$0xff] %v48
  %65 = vst [vmem:[%s2 + $0x30] sm:$0xff] %v49
  %66 = vst [vmem:[%s2 + $0x38] sm:$0xff] %v50
  %67 = vst [vmem:[%s2 + $0x40] sm:$0xff] %v51
  %68 = vst [vmem:[%s2 + $0x48] sm:$0xff] %v52
  %69 = vst [vmem:[%s2 + $0x50] sm:$0xff] %v53
  %70 = vst [vmem:[%s2 + $0x58] sm:$0xff] %v54
  %71 = vst [vmem:[%s2 + $0x60] sm:$0xff] %v55
  %72 = vst [vmem:[%s2 + $0x68] sm:$0xff] %v56
  %73 = vst [vmem:[%s2 + $0x70] sm:$0xff] %v57
  %74 = vst [vmem:[%s2 + $0x78] sm:$0xff] %v58
  // Predicated region
  $region10: #{learnable_positional_encoding.1} parent=0 // pred_check
    _
  $region11: #{learnable_positional_encoding.1} parent=0 // pred_check_branch
    %76 = sbr.rel (0) target = $region13
  $region12: #{learnable_positional_encoding.1} parent=0 // pred_region
    _
  $region13: #{learnable_positional_encoding.1} parent=0 // pred_fallthru
    _
  // Predicated region
  $region14: #{learnable_positional_encoding.1} parent=0 // pred_check
    _
  $region15: #{learnable_positional_encoding.1} parent=0 // pred_check_branch
    %78 = sbr.rel (0) target = $region17
  $region16: #{learnable_positional_encoding.1} parent=0 // pred_region
    _
  $region17: #{learnable_positional_encoding.1} parent=0 // pred_fallthru
    _

</llo_original>
